<compile_context>
chip_gen: v7x
topology: tpu7x:2x2x1
jax: 0.10.0
libtpu: 0.0.40
codegen_flags: <defaults>
</compile_context>

<pallas_src>
import functools

import jax
import jax.numpy as jnp
from jax.experimental import pallas as pl
from jax.experimental.pallas import tpu as pltpu


_LANE = 512  # lane-dense last dim (multiple of 128 -> unmasked full-width vst)

# Minimum sublane tile (second-to-last dim) per element width.
_SUBLANE_BY_DTYPE = {
    jnp.dtype(jnp.float32): 8,
    jnp.dtype(jnp.bfloat16): 16,
    jnp.dtype(jnp.float16): 16,
}


def _horner_envelope(x, *, p, a, b, c):
    """Shared math: 1/x + x^(p-1) * (a + x*(b + c*x)), computed in f32."""
    xf = x.astype(jnp.float32)
    # x^(p-1) via repeated squaring at trace time (p is a static Python int).
    e = p - 1
    xp = None
    base = xf
    while e > 0:
        if e & 1:
            xp = base if xp is None else xp * base
        if e > 1:
            base = base * base
        e >>= 1
    if xp is None:
        xp = jnp.ones_like(xf)
    # Horner form keeps only x / xp / poly live -> low vreg pressure.
    poly = a + xf * (b + c * xf)
    return (1.0 / xf + xp * poly).astype(x.dtype)


def _envelope_kernel(x_ref, o_ref, *, p, a, b, c):
    o_ref[...] = _horner_envelope(x_ref[...], p=p, a=a, b=b, c=c)


def _round_up(v, m):
    return (v + m - 1) // m * m


def envelope(x, exponent, *, max_block_bytes=4 * 1024 * 1024):
    """Pallas TPU implementation of Envelope(exponent).forward(x).

    Accepts any input shape (elementwise op). Aligned sizes stream zero-copy
    through a lane-dense (rows, 512) view; unaligned sizes pad only to the
    next sublane-aligned row count. Inputs of 0 return inf, like the
    reference.
    """
    p = exponent + 1
    a = -(p + 1) * (p + 2) / 2.0
    b = float(p * (p + 2))
    c = -p * (p + 1) / 2.0

    dtype = jnp.dtype(x.dtype)
    if dtype not in _SUBLANE_BY_DTYPE:
        raise NotImplementedError(f"envelope: unsupported dtype {dtype}")
    sublane = _SUBLANE_BY_DTYPE[dtype]
    itemsize = dtype.itemsize

    orig_shape = x.shape
    flat = x.reshape(-1)  # contiguous flatten: free bitcast under XLA
    n = flat.shape[0]
    chunk = sublane * _LANE  # one minimum tile worth of elements

    # Small-input fast path: launch/pad/reshape overheads dominate a sub-tile
    # elementwise kernel; a fused XLA expression is strictly cheaper here and
    # avoids the grid=(1,) single-TensorCore case on v7x.
    if n <= chunk:
        return _horner_envelope(x, p=p, a=a, b=b, c=c)

    aligned = (n % chunk) == 0
    if aligned:
        # Zero-copy path: no pad, no output slice -- just the kernel's own
        # HBM read + write.
        rows = n // _LANE
        x2d = flat.reshape(rows, _LANE)
    else:
        # Ragged path: pad only to the next sublane-aligned row count (NOT to
        # a block multiple). Pad with 1.0 so 1/x stays finite; the padded
        # tail is sliced off afterwards.
        rows = _round_up(pl.cdiv(n, _LANE), sublane)
        padded_n = rows * _LANE
        flat = jnp.pad(flat, (0, padded_n - n), constant_values=1)
        x2d = flat.reshape(rows, _LANE)

    # Block rows: target ~max_block_bytes per block, but cap so the grid has
    # length >= ~4 on medium inputs (lets the "parallel" axis shard across
    # both v7x TensorCores). Always a multiple of the sublane quantum.
    target_rows = max(
        sublane, (max_block_bytes // (itemsize * _LANE)) // sublane * sublane
    )
    quarter_rows = _round_up(pl.cdiv(rows, 4), sublane)
    block_rows = max(sublane, min(target_rows, quarter_rows))
    grid = (pl.cdiv(rows, block_rows),)  # partial last block masked by Pallas

    block_bytes = block_rows * _LANE * itemsize
    # in + out, double-buffered, plus headroom; stays under v7x's 64 MiB VMEM.
    vmem_limit = min(64 << 20, max(32 << 20, 4 * block_bytes + (4 << 20)))

    kernel = functools.partial(_envelope_kernel, p=p, a=a, b=b, c=c)

    out2d = pl.pallas_call(
        kernel,
        out_shape=jax.ShapeDtypeStruct((rows, _LANE), dtype),
        grid_spec=pl.GridSpec(
            grid=grid,
            in_specs=[pl.BlockSpec((block_rows, _LANE), lambda i: (i, 0))],
            out_specs=pl.BlockSpec((block_rows, _LANE), lambda i: (i, 0)),
        ),
        compiler_params=pltpu.CompilerParams(
            dimension_semantics=("parallel",),
            vmem_limit_bytes=vmem_limit,
        ),
        cost_estimate=pl.CostEstimate(
            flops=12 * rows * _LANE,
            transcendentals=0,
            bytes_accessed=2 * rows * _LANE * itemsize,
        ),
    )(x2d)

    if aligned:
        return out2d.reshape(orig_shape)
    return out2d.reshape(-1)[:n].reshape(orig_shape)


def envelope_ref(x, exponent):
    """Pure-JAX reference matching the PyTorch module exactly."""
    p = exponent + 1
    a = -(p + 1) * (p + 2) / 2.0
    b = float(p * (p + 2))
    c = -p * (p + 1) / 2.0
    x_pow_p0 = x ** (p - 1)
    x_pow_p1 = x_pow_p0 * x
    x_pow_p2 = x_pow_p1 * x
    return 1.0 / x + a * x_pow_p0 + b * x_pow_p1 + c * x_pow_p2


if __name__ == "__main__":
    exponent = 5  # typical SphereNet/DimeNet default

    key = jax.random.PRNGKey(0)
    k1, k2, k3 = jax.random.split(key, 3)

    # Radial distances as SphereNet sees them: (num_edges, 1) in (0, 1];
    # small enough to take the fused-jnp fast path.
    x1 = jax.random.uniform(k1, (512, 1), jnp.float32, minval=0.05, maxval=1.0)
    # Aligned size (96*512 elements, multiple of 8*512): zero-copy Pallas path.
    x2 = jax.random.uniform(k2, (96, 512), jnp.float32, minval=0.05, maxval=1.0)
    # Awkward unaligned shape: minimal-pad Pallas path with a partial block.
    x3 = jax.random.uniform(k3, (3, 57, 65), jnp.float32, minval=0.05, maxval=1.0)

    outs = [jax.block_until_ready(envelope(xi, exponent)) for xi in (x1, x2, x3)]
    refs = [envelope_ref(xi, exponent) for xi in (x1, x2, x3)]

    for o, r in zip(outs, refs):
        assert o.shape == r.shape and o.dtype == r.dtype
        # f32 reassociation (Horner vs. term-by-term) near the x -> 1 zero of
        # the envelope limits agreement to a few ULPs of the O(50)-magnitude
        # intermediate terms, hence the 5e-5 atol.
        assert jnp.allclose(o, r, rtol=1e-5, atol=5e-5), "envelope mismatch"

    print("KERNEL_OK")
</pallas_src>

<mosaic_0001>
module attributes {stable_mosaic.version = 11 : i64} {
  func.func @_envelope_kernel(%arg0: i32, %arg1: memref<24x512xf32, #tpu.memory_space<vmem>>, %arg2: memref<24x512xf32, #tpu.memory_space<vmem>>) attributes {dimension_semantics = [#tpu.dimension_semantics<parallel>], iteration_bounds = array<i64: 4>, scalar_prefetch = 0 : i64, scratch_operands = 0 : i64, tpu.core_type = #tpu.core_type<tc>, window_params = [{transform_indices = @transform_0, window_bounds = array<i64: 24, 512>}, {transform_indices = @transform_1, window_bounds = array<i64: 24, 512>}]} {
    %c0 = arith.constant 0 : index
    %c0_0 = arith.constant 0 : index
    %0 = vector.load %arg1[%c0, %c0_0] : memref<24x512xf32, #tpu.memory_space<vmem>>, vector<24x512xf32>
    %1 = arith.mulf %0, %0 : vector<24x512xf32>
    %2 = arith.mulf %1, %1 : vector<24x512xf32>
    %3 = arith.mulf %0, %2 : vector<24x512xf32>
    %cst = arith.constant -2.100000e+01 : f32
    %4 = vector.broadcast %cst : f32 to vector<24x512xf32>
    %5 = arith.mulf %4, %0 : vector<24x512xf32>
    %cst_1 = arith.constant 4.800000e+01 : f32
    %6 = vector.broadcast %cst_1 : f32 to vector<24x512xf32>
    %7 = arith.addf %6, %5 : vector<24x512xf32>
    %8 = arith.mulf %0, %7 : vector<24x512xf32>
    %cst_2 = arith.constant -2.800000e+01 : f32
    %9 = vector.broadcast %cst_2 : f32 to vector<24x512xf32>
    %10 = arith.addf %9, %8 : vector<24x512xf32>
    %cst_3 = arith.constant 1.000000e+00 : f32
    %11 = vector.broadcast %cst_3 : f32 to vector<24x512xf32>
    %12 = arith.divf %11, %0 : vector<24x512xf32>
    %13 = arith.mulf %3, %10 : vector<24x512xf32>
    %14 = arith.addf %12, %13 : vector<24x512xf32>
    %c0_4 = arith.constant 0 : index
    %c0_5 = arith.constant 0 : index
    %15 = vector.load %arg2[%c0_4, %c0_5] : memref<24x512xf32, #tpu.memory_space<vmem>>, vector<24x512xf32>
    tpu.vector_store %arg2[%c0_4, %c0_5], %14 {strides = array<i32>} : memref<24x512xf32, #tpu.memory_space<vmem>>, vector<24x512xf32>,
    return
  }
  func.func @transform_0(%arg0: i32) -> (i32, i32) {
    %c0_i32 = arith.constant 0 : i32
    %c0_i32_0 = arith.constant 0 : i32
    return %arg0, %c0_i32 : i32, i32
  }
  func.func @transform_1(%arg0: i32) -> (i32, i32) {
    %c0_i32 = arith.constant 0 : i32
    %c0_i32_0 = arith.constant 0 : i32
    return %arg0, %c0_i32 : i32, i32
  }
}

</mosaic_0001>

<llo_original>
// kernel: tpu_custom_call.1
$region0: #{tpu_custom_call.1}
  #allocation0 [shape = 'u32[]', space=smem, size = 0x4, offset = 0x4, fixed_abs, tag = 'smem constant byte address 0x4 - core index']
  #allocation1 [shape = 'u32[144,128]{1,0:T(1,128)}', space=vmem, size = 0x12000, scoped, tag = 'internal scratch']
  %s0 = inlined_call_operand.hbm [shape: f32[96,512], index: 0, kind: input, shape index: {}]
  %s1 = inlined_call_operand.hbm [shape: f32[96,512], index: 1, kind: output, shape index: {}]
  %s2 = sld [smem:[#allocation0]]
  $region41: #{tpu_custom_call.1} parent=0
    _
  %s4 = ssub.s32 1, %s2
  %s5 = scalar_select 0, %s4, %s2
  $region1: #{tpu_custom_call.1} parent=0
    #allocation2 [shape = 'u8[98304]{0}', space=vmem, size = 0x18000, scoped, tag = 'input window, operand 0']
    #allocation3 [shape = 's32[2]{0}', space=sflag, size = 0x8, scoped, tag = 'scoped memory for tpu_custom_call.1']
    #allocation4 [shape = 's32[2]{0}', space=sflag, size = 0x8, scoped, tag = 'scoped memory for tpu_custom_call.1']
    #allocation5 [shape = 'u8[98304]{0}', space=vmem, size = 0x18000, scoped, tag = 'output window, operand 0']
    %6 = vsyncpa [#allocation3], 0
    %s7 = scalar_lea.sflag [#allocation3], 1
    %8 = vsyncpa %s7, 0
    %9 = vsyncpa [#allocation4], 0
    %s10 = scalar_lea.sflag [#allocation4], 1
    %11 = vsyncpa %s10, 0
    loop: start=0, step=1, limit=6
    $region2: #{tpu_custom_call.1} parent=1 // loop_pre_header
      _
    $region3: #{tpu_custom_call.1} parent=1 // loop_header
      %s13 = sphi 0, %s17
      %p14 = scmp.ge.s32.totalorder %s13, 6
      %s23 = sphi 0, %s25
      %s26 = sphi 0, %s23
      %s27 = sphi 0, %s26
      %s43 = sphi 0, %s27
      %s49 = sphi 0, %s51
      %s52 = sphi 0, %s49
      %s53 = sphi 0, %s52
      %s69 = sphi 0, %s53
    $region4: #{tpu_custom_call.1} parent=1 // loop_header_branch
      %16 = sbr.rel (%p14) target = $region8
    $region5: #{tpu_custom_call.1} parent=1 // loop_body
      %s18 = ssub.s32 %s13, 1
      %s19 = ssub.s32 %s13, 2
      %s20 = sadd.s32 %s13, 1
      %s21 = ssub.s32 %s13, %s20
      %p22 = scmp.eq.s32.totalorder %s21, 0
      %s24 = sadd.s32 %s23, 1
      %s25 = scalar_select %p22, %s23, %s24
      %p28 = pneg %p22
      %p29 = scmp.eq.s32.totalorder %s13, 3
      %p30 = por %p28, %p29
      %p31 = scmp.ne.s32.totalorder %s23, %s26
      %p32 = scmp.eq.s32.totalorder %s13, 0
      %p33 = por %p31, %p32
      %p34 = scmp.ne.s32.totalorder %s23, %s26
      %p35 = scmp.eq.s32.totalorder %s18, 3
      %p36 = por %p34, %p35
      %p37 = scmp.ne.s32.totalorder %s26, %s27
      %p38 = scmp.eq.s32.totalorder %s18, 0
      %p39 = por %p37, %p38
      %p40 = scmp.ne.s32.totalorder %s26, %s27
      %p41 = scmp.eq.s32.totalorder %s19, 3
      %p42 = por %p40, %p41
      %p44 = scmp.ne.s32.totalorder %s27, %s43
      %p45 = scmp.eq.s32.totalorder %s19, 0
      %p46 = por %p44, %p45
      %s47 = ssub.s32 %s13, %s20
      %p48 = scmp.eq.s32.totalorder %s47, 0
      %s50 = sadd.s32 %s49, 1
      %s51 = scalar_select %p48, %s49, %s50
      %p54 = pneg %p48
      %p55 = scmp.eq.s32.totalorder %s13, 3
      %p56 = por %p54, %p55
      %p57 = scmp.ne.s32.totalorder %s49, %s52
      %p58 = scmp.eq.s32.totalorder %s13, 0
      %p59 = por %p57, %p58
      %p60 = scmp.ne.s32.totalorder %s49, %s52
      %p61 = scmp.eq.s32.totalorder %s18, 3
      %p62 = por %p60, %p61
      %p63 = scmp.ne.s32.totalorder %s52, %s53
      %p64 = scmp.eq.s32.totalorder %s18, 0
      %p65 = por %p63, %p64
      %p66 = scmp.ne.s32.totalorder %s52, %s53
      %p67 = scmp.eq.s32.totalorder %s19, 3
      %p68 = por %p66, %p67
      %p70 = scmp.ne.s32.totalorder %s53, %s69
      %p71 = scmp.eq.s32.totalorder %s19, 0
      %p72 = por %p70, %p71
      %p73 = scmp.le.s32.totalorder 1, %s13
      %p74 = scmp.lt.s32.totalorder %s13, 5
      %p75 = pnand %p73, %p74
      %p76 = pneg %p75
      // Predicated region
      $region9: #{tpu_custom_call.1} parent=5 // pred_check
        _
      $region10: #{tpu_custom_call.1} parent=5 // pred_check_branch
        %78 = sbr.rel (%p75) target = $region12
      $region11: #{tpu_custom_call.1} parent=5 // pred_region
        %s79 = ssub.s32 %s13, 1
      $region12: #{tpu_custom_call.1} parent=5 // pred_fallthru
        _
      %p80 = scmp.lt.s32.totalorder %s13, 4
      // Predicated region
      $region13: #{tpu_custom_call.1} parent=5 // pred_check
        %p81 = pneg %p80
      $region14: #{tpu_custom_call.1} parent=5 // pred_check_branch
        %83 = sbr.rel (%p81) target = $region16
      $region15: #{tpu_custom_call.1} parent=5 // pred_region
        // Predicated region
        $region17: #{tpu_custom_call.1} parent=15 // pred_check
          %p84 = pneg %p33
        $region18: #{tpu_custom_call.1} parent=15 // pred_check_branch
          %86 = sbr.rel (%p84) target = $region20
        $region19: #{tpu_custom_call.1} parent=15 // pred_region
          %s87 = sand.u32 %s23, 1
          %s88 = scalar_lea.sflag [#allocation3], %s87
          %s89 = sand.u32 %s23, 1
          %s90 = smul.addr %s89, 96
          %s91 = scalar_lea.vmem [#allocation2], %s90
          %s92 = smul.u32 3, %s13
          %s94 = ssub.s32 1536, 1536
          %95 = vsyncadd %s88, %s94
          %s96 = smul.addr %s92, 4
          %s97 = smul.addr %s96, 128
          %s98 = scalar_lea.hbm %s0, %s97
          %s99 = sshll.u32 %s91, 4
          %s100 = int_to_ptr.vmem [resolvable:$true] %s99
          %105 = dma.hbm_to_vmem [thread:$0]  %s98, 1536, %s100, %s88, 512, 512, 32
        $region20: #{tpu_custom_call.1} parent=15 // pred_fallthru
          _
      $region16: #{tpu_custom_call.1} parent=5 // pred_fallthru
        _
      %p106 = scmp.le.s32.totalorder 1, %s13
      %p107 = scmp.lt.s32.totalorder %s13, 5
      %p108 = pnand %p106, %p107
      %p109 = pneg %p108
      // Predicated region
      $region21: #{tpu_custom_call.1} parent=5 // pred_check
        _
      $region22: #{tpu_custom_call.1} parent=5 // pred_check_branch
        %111 = sbr.rel (%p108) target = $region24
      $region23: #{tpu_custom_call.1} parent=5 // pred_region
        %s112 = ssub.s32 %s13, 1
        %s113 = sand.u32 %s26, 1
        %s114 = scalar_lea.sflag [#allocation3], %s113
        %s115 = sand.u32 %s26, 1
        %s116 = smul.addr %s115, 96
        %s117 = scalar_lea.vmem [#allocation2], %s116
        // Predicated region
        $region25: #{tpu_custom_call.1} parent=23 // pred_check
          %p118 = pneg %p39
        $region26: #{tpu_custom_call.1} parent=23 // pred_check_branch
          %120 = sbr.rel (%p118) target = $region28
        $region27: #{tpu_custom_call.1} parent=23 // pred_region
          %121 = dma.done %s114, 1536
        $region28: #{tpu_custom_call.1} parent=23 // pred_fallthru
          _
        %s122 = sand.u32 %s26, 1
        %s123 = scalar_lea.sflag [#allocation3], %s122
        %s124 = sand.u32 %s26, 1
        %s125 = smul.addr %s124, 96
        %s126 = scalar_lea.vmem [#allocation2], %s125
        %p127 = pneg %p39
        %p128 = pneg %p36
        %p129 = pneg %p65
        %p130 = pneg %p62
        %s131 = sand.u32 %s52, 1
        %s132 = scalar_lea.sflag [#allocation4], %s131
        %s133 = sand.u32 %s52, 1
        %s134 = smul.addr %s133, 96
        %s135 = scalar_lea.vmem [#allocation5], %s134
        %s136 = smul.u32 3, %s18
        %s137 = smul.u32 3, %s18
        %v138 = vld [vmem:[%s117] sm:$0xff]
        %v139 = vld [vmem:[%s117 + $0x8] sm:$0xff]
        %v140 = vld [vmem:[%s117 + $0x10] sm:$0xff]
        %v141 = vld [vmem:[%s117 + $0x18] sm:$0xff]
        %v142 = vld [vmem:[%s117 + $0x20] sm:$0xff]
        %v143 = vld [vmem:[%s117 + $0x28] sm:$0xff]
        %v144 = vld [vmem:[%s117 + $0x30] sm:$0xff]
        %v145 = vld [vmem:[%s117 + $0x38] sm:$0xff]
        %v146 = vld [vmem:[%s117 + $0x40] sm:$0xff]
        %v147 = vld [vmem:[%s117 + $0x48] sm:$0xff]
        %v148 = vld [vmem:[%s117 + $0x50] sm:$0xff]
        %v149 = vld [vmem:[%s117 + $0x58] sm:$0xff]
        %v150 = vmul.f32 %v138, %v138
        %v151 = vmul.f32 %v139, %v139
        %v152 = vmul.f32 %v140, %v140
        %v153 = vmul.f32 %v141, %v141
        %v154 = vmul.f32 %v142, %v142
        %v155 = vmul.f32 %v143, %v143
        %v156 = vmul.f32 %v144, %v144
        %v157 = vmul.f32 %v145, %v145
        %v158 = vmul.f32 %v146, %v146
        %v159 = vmul.f32 %v147, %v147
        %v160 = vmul.f32 %v148, %v148
        %v161 = vmul.f32 %v149, %v149
        %v162 = vmul.f32 %v150, %v150
        %v163 = vmul.f32 %v151, %v151
        %v164 = vmul.f32 %v152, %v152
        %v165 = vmul.f32 %v153, %v153
        %v166 = vmul.f32 %v154, %v154
        %v167 = vmul.f32 %v155, %v155
        %v168 = vmul.f32 %v156, %v156
        %v169 = vmul.f32 %v157, %v157
        %v170 = vmul.f32 %v158, %v158
        %v171 = vmul.f32 %v159, %v159
        %v172 = vmul.f32 %v160, %v160
        %v173 = vmul.f32 %v161, %v161
        %v174 = vmul.f32 %v138, %v162
        %v175 = vmul.f32 %v139, %v163
        %v176 = vmul.f32 %v140, %v164
        %v177 = vmul.f32 %v141, %v165
        %v178 = vmul.f32 %v142, %v166
        %v179 = vmul.f32 %v143, %v167
        %v180 = vmul.f32 %v144, %v168
        %v181 = vmul.f32 %v145, %v169
        %v182 = vmul.f32 %v146, %v170
        %v183 = vmul.f32 %v147, %v171
        %v184 = vmul.f32 %v148, %v172
        %v185 = vmul.f32 %v149, %v173
        %v186 = vmul.f32 %v138, -21.0
        %v187 = vmul.f32 %v139, -21.0
        %v188 = vmul.f32 %v140, -21.0
        %v189 = vmul.f32 %v141, -21.0
        %v190 = vmul.f32 %v142, -21.0
        %v191 = vmul.f32 %v143, -21.0
        %v192 = vmul.f32 %v144, -21.0
        %v193 = vmul.f32 %v145, -21.0
        %v194 = vmul.f32 %v146, -21.0
        %v195 = vmul.f32 %v147, -21.0
        %v196 = vmul.f32 %v148, -21.0
        %v197 = vmul.f32 %v149, -21.0
        %v198 = vadd.f32 %v186, 48.0
        %v199 = vadd.f32 %v187, 48.0
        %v200 = vadd.f32 %v188, 48.0
        %v201 = vadd.f32 %v189, 48.0
        %v202 = vadd.f32 %v190, 48.0
        %v203 = vadd.f32 %v191, 48.0
        %v204 = vadd.f32 %v192, 48.0
        %v205 = vadd.f32 %v193, 48.0
        %v206 = vadd.f32 %v194, 48.0
        %v207 = vadd.f32 %v195, 48.0
        %v208 = vadd.f32 %v196, 48.0
        %v209 = vadd.f32 %v197, 48.0
        %v210 = vmul.f32 %v138, %v198
        %v211 = vmul.f32 %v139, %v199
        %v212 = vmul.f32 %v140, %v200
        %v213 = vmul.f32 %v141, %v201
        %v214 = vmul.f32 %v142, %v202
        %v215 = vmul.f32 %v143, %v203
        %v216 = vmul.f32 %v144, %v204
        %v217 = vmul.f32 %v145, %v205
        %v218 = vmul.f32 %v146, %v206
        %v219 = vmul.f32 %v147, %v207
        %v220 = vmul.f32 %v148, %v208
        %v221 = vmul.f32 %v149, %v209
        %v222 = vadd.f32 %v210, -28.0
        %v223 = vadd.f32 %v211, -28.0
        %v224 = vadd.f32 %v212, -28.0
        %v225 = vadd.f32 %v213, -28.0
        %v226 = vadd.f32 %v214, -28.0
        %v227 = vadd.f32 %v215, -28.0
        %v228 = vadd.f32 %v216, -28.0
        %v229 = vadd.f32 %v217, -28.0
        %v230 = vadd.f32 %v218, -28.0
        %v231 = vadd.f32 %v219, -28.0
        %v232 = vadd.f32 %v220, -28.0
        %v233 = vadd.f32 %v221, -28.0
        %v234 = vrcp.pop %v138
        %v235 = vmul.f32 1.0, %v234
        %v236 = vrcp.pop %v139
        %v237 = vmul.f32 1.0, %v236
        %v238 = vrcp.pop %v140
        %v239 = vmul.f32 1.0, %v238
        %v240 = vrcp.pop %v141
        %v241 = vmul.f32 1.0, %v240
        %v242 = vrcp.pop %v142
        %v243 = vmul.f32 1.0, %v242
        %v244 = vrcp.pop %v143
        %v245 = vmul.f32 1.0, %v244
        %v246 = vrcp.pop %v144
        %v247 = vmul.f32 1.0, %v246
        %v248 = vrcp.pop %v145
        %v249 = vmul.f32 1.0, %v248
        %v250 = vrcp.pop %v146
        %v251 = vmul.f32 1.0, %v250
        %v252 = vrcp.pop %v147
        %v253 = vmul.f32 1.0, %v252
        %v254 = vrcp.pop %v148
        %v255 = vmul.f32 1.0, %v254
        %v256 = vrcp.pop %v149
        %v257 = vmul.f32 1.0, %v256
        %v258 = vmul.f32 %v174, %v222
        %v259 = vmul.f32 %v175, %v223
        %v260 = vmul.f32 %v176, %v224
        %v261 = vmul.f32 %v177, %v225
        %v262 = vmul.f32 %v178, %v226
        %v263 = vmul.f32 %v179, %v227
        %v264 = vmul.f32 %v180, %v228
        %v265 = vmul.f32 %v181, %v229
        %v266 = vmul.f32 %v182, %v230
        %v267 = vmul.f32 %v183, %v231
        %v268 = vmul.f32 %v184, %v232
        %v269 = vmul.f32 %v185, %v233
        %v270 = vadd.f32 %v235, %v258
        %v271 = vadd.f32 %v237, %v259
        %v272 = vadd.f32 %v239, %v260
        %v273 = vadd.f32 %v241, %v261
        %v274 = vadd.f32 %v243, %v262
        %v275 = vadd.f32 %v245, %v263
        %v276 = vadd.f32 %v247, %v264
        %v277 = vadd.f32 %v249, %v265
        %v278 = vadd.f32 %v251, %v266
        %v279 = vadd.f32 %v253, %v267
        %v280 = vadd.f32 %v255, %v268
        %v281 = vadd.f32 %v257, %v269
        %282 = vst [vmem:[%s135] sm:$0xff] %v270
        %283 = vst [vmem:[%s135 + $0x8] sm:$0xff] %v271
        %284 = vst [vmem:[%s135 + $0x10] sm:$0xff] %v272
        %285 = vst [vmem:[%s135 + $0x18] sm:$0xff] %v273
        %286 = vst [vmem:[%s135 + $0x20] sm:$0xff] %v274
        %287 = vst [vmem:[%s135 + $0x28] sm:$0xff] %v275
        %288 = vst [vmem:[%s135 + $0x30] sm:$0xff] %v276
        %289 = vst [vmem:[%s135 + $0x38] sm:$0xff] %v277
        %290 = vst [vmem:[%s135 + $0x40] sm:$0xff] %v278
        %291 = vst [vmem:[%s135 + $0x48] sm:$0xff] %v279
        %292 = vst [vmem:[%s135 + $0x50] sm:$0xff] %v280
        %293 = vst [vmem:[%s135 + $0x58] sm:$0xff] %v281
        %s294 = sand.u32 %s52, 1
        %s295 = scalar_lea.sflag [#allocation4], %s294
        %s296 = sand.u32 %s52, 1
        %s297 = smul.addr %s296, 96
        %s298 = scalar_lea.vmem [#allocation5], %s297
        // Predicated region
        $region29: #{tpu_custom_call.1} parent=23 // pred_check
          %p299 = pneg %p62
        $region30: #{tpu_custom_call.1} parent=23 // pred_check_branch
          %301 = sbr.rel (%p299) target = $region32
        $region31: #{tpu_custom_call.1} parent=23 // pred_region
          %s302 = smul.u32 3, %s18
          %s304 = ssub.s32 1536, 1536
          %305 = vsyncadd %s295, %s304
          %s306 = smul.addr %s302, 4
          %s307 = smul.addr %s306, 128
          %s308 = scalar_lea.hbm %s1, %s307
          %s309 = sshll.u32 %s298, 4
          %s310 = int_to_ptr.vmem [resolvable:$true] %s309
          %315 = dma.vmem_to_hbm [thread:$0]  %s310, 1536, %s308, %s295, 512, 512, 32
        $region32: #{tpu_custom_call.1} parent=23 // pred_fallthru
          _
      $region24: #{tpu_custom_call.1} parent=5 // pred_fallthru
        _
      %p316 = scmp.le.s32.totalorder 2, %s13
      // Predicated region
      $region33: #{tpu_custom_call.1} parent=5 // pred_check
        %p317 = pneg %p316
      $region34: #{tpu_custom_call.1} parent=5 // pred_check_branch
        %319 = sbr.rel (%p317) target = $region36
      $region35: #{tpu_custom_call.1} parent=5 // pred_region
        %s320 = ssub.s32 %s13, 2
        // Predicated region
        $region37: #{tpu_custom_call.1} parent=35 // pred_check
          %p321 = pneg %p68
        $region38: #{tpu_custom_call.1} parent=35 // pred_check_branch
          %323 = sbr.rel (%p321) target = $region40
        $region39: #{tpu_custom_call.1} parent=35 // pred_region
          %s324 = sand.u32 %s53, 1
          %s325 = scalar_lea.sflag [#allocation4], %s324
          %s326 = sand.u32 %s53, 1
          %s327 = smul.addr %s326, 96
          %s328 = scalar_lea.vmem [#allocation5], %s327
          %329 = dma.done %s325, 1536
        $region40: #{tpu_custom_call.1} parent=35 // pred_fallthru
          _
      $region36: #{tpu_custom_call.1} parent=5 // pred_fallthru
        _
    $region6: #{tpu_custom_call.1} parent=1 // loop_footer
      %s17 = sadd.s32 1, %s13
    $region7: #{tpu_custom_call.1} parent=1 // loop_footer_branch
      %12 = sbr.rel target = $region3
    $region8: #{tpu_custom_call.1} parent=1 // loop_exit
      _
    %330 = vsyncpa [#allocation3], 1
    %s331 = scalar_lea.sflag [#allocation3], 1
    %332 = vsyncpa %s331, 1
    %333 = vsyncpa [#allocation4], 1
    %s334 = scalar_lea.sflag [#allocation4], 1
    %335 = vsyncpa %s334, 1

</llo_original>
